<compile_context>
chip_gen: v6e
topology: v6e:2x2x1
jax: 0.10.0
libtpu: 0.0.40
codegen_flags: <defaults>
</compile_context>

<pallas_src>
import functools

import jax
import jax.numpy as jnp
from jax.experimental import pallas as pl
from jax.experimental.pallas import tpu as pltpu

LANE = 128
ACC_SUBLANES = 64                 # resident accumulator slab (64, 128) f32
MAX_BLOCK_ROWS = 8192             # (8192, 128) f32 = 4 MiB per input per block
NUM_SHARDS = 2                    # leading "parallel" axis (2 TCs on v7x)
SMALL_N_THRESHOLD = 128 * 1024    # below this, fused XLA beats kernel launch
VMEM_LIMIT_BYTES = 32 << 20       # 2 inputs x 2 bufs x 4 MiB = 16 MiB + slack


def _round_up(x, m):
    return ((x + m - 1) // m) * m


def _l1_partial_sum_kernel(pred_ref, gt_ref, out_ref, *,
                           block_rows, valid_rows, needs_mask):
    """Accumulate per-shard lane-parallel partial sums of |pred - gt|."""
    step = pl.program_id(1)

    @pl.when(step == 0)
    def _():
        out_ref[...] = jnp.zeros_like(out_ref)

    p = pred_ref[...].astype(jnp.float32)
    g = gt_ref[...].astype(jnp.float32)
    d = jnp.abs(p - g)                                  # (1, block_rows, LANE)

    def _accumulate(vals):
        # Fold onto a wide (ACC_SUBLANES, LANE) slab: many independent
        # destination vregs -> ILP on the 4 VALU slots, no long serial chain.
        out_ref[...] += jnp.sum(
            vals.reshape(block_rows // ACC_SUBLANES, ACC_SUBLANES, LANE),
            axis=0)[None]

    if needs_mask:
        last = pl.num_programs(1) - 1

        @pl.when(step == last)
        def _():
            row_ids = step * block_rows + jax.lax.broadcasted_iota(
                jnp.int32, (1, block_rows, LANE), 1)
            # Keep the select (not multiply-by-mask) so NaN/Inf garbage from
            # the out-of-bounds rows of the trailing partial block is dropped.
            _accumulate(jnp.where(row_ids < valid_rows, d, jnp.float32(0.0)))

        @pl.when(step != last)
        def _():
            _accumulate(d)
    else:
        _accumulate(d)


def loss_rec_l1(pred_v, gt_v):
    """Mean absolute error, matching torch.nn.L1Loss(reduction='mean')."""
    assert pred_v.shape == gt_v.shape, "L1Loss expects matching shapes"
    n_elems = pred_v.size

    # Tiny inputs: pallas_call fixed cost dwarfs the work -> fused XLA.
    if n_elems < SMALL_N_THRESHOLD:
        return jnp.mean(
            jnp.abs(pred_v.astype(jnp.float32) - gt_v.astype(jnp.float32))
        ).astype(jnp.float32)

    flat_p = pred_v.reshape(-1)
    flat_g = gt_v.reshape(-1)

    aligned = (n_elems // LANE) * LANE
    rows = aligned // LANE

    # Pick the shard count so the (num_shards, rows_per_shard, 128) view is a
    # free reshape whenever the element count is lane-aligned.
    if aligned == n_elems:
        num_shards = NUM_SHARDS if rows % NUM_SHARDS == 0 else 1
        kernel_rows = rows
    else:
        num_shards = NUM_SHARDS if rows >= NUM_SHARDS else 1
        kernel_rows = (rows // num_shards) * num_shards

    kernel_elems = kernel_rows * LANE
    rows_per_shard = kernel_rows // num_shards

    block_rows = min(MAX_BLOCK_ROWS, _round_up(rows_per_shard, ACC_SUBLANES))
    steps = (rows_per_shard + block_rows - 1) // block_rows
    needs_mask = (rows_per_shard % block_rows) != 0

    if kernel_elems == n_elems:
        p3 = flat_p.reshape(num_shards, rows_per_shard, LANE)
        g3 = flat_g.reshape(num_shards, rows_per_shard, LANE)
    else:
        # TODO(synk): for non-128-multiple sizes this prefix slice materializes
        # a copy before the kernel; acceptable, but lane-aligned inputs stay
        # zero-copy.
        p3 = flat_p[:kernel_elems].reshape(num_shards, rows_per_shard, LANE)
        g3 = flat_g[:kernel_elems].reshape(num_shards, rows_per_shard, LANE)

    kernel = functools.partial(
        _l1_partial_sum_kernel,
        block_rows=block_rows,
        valid_rows=rows_per_shard,
        needs_mask=needs_mask,
    )

    itemsize = jnp.dtype(pred_v.dtype).itemsize
    cost = pl.CostEstimate(
        flops=3 * kernel_elems,
        transcendentals=0,
        bytes_accessed=2 * kernel_elems * itemsize
        + num_shards * ACC_SUBLANES * LANE * 4,
    )

    partials = pl.pallas_call(
        kernel,
        out_shape=jax.ShapeDtypeStruct(
            (num_shards, ACC_SUBLANES, LANE), jnp.float32),
        grid_spec=pltpu.PrefetchScalarGridSpec(
            num_scalar_prefetch=0,
            grid=(num_shards, steps),
            in_specs=[
                pl.BlockSpec((1, block_rows, LANE), lambda c, i: (c, i, 0)),
                pl.BlockSpec((1, block_rows, LANE), lambda c, i: (c, i, 0)),
            ],
            # Per-shard resident accumulator block: constant over the
            # reduction ("arbitrary") axis, distinct per "parallel" shard.
            out_specs=pl.BlockSpec((1, ACC_SUBLANES, LANE),
                                   lambda c, i: (c, 0, 0)),
        ),
        compiler_params=pltpu.CompilerParams(
            dimension_semantics=("parallel", "arbitrary"),
            vmem_limit_bytes=VMEM_LIMIT_BYTES,
        ),
        cost_estimate=cost,
    )(p3, g3)

    total = jnp.sum(partials)

    if kernel_elems != n_elems:
        # Remainder (< num_shards*128 + 128 elements) in plain JAX.
        tail = jnp.sum(jnp.abs(flat_p[kernel_elems:].astype(jnp.float32)
                               - flat_g[kernel_elems:].astype(jnp.float32)))
        total = total + tail

    return (total / jnp.float32(n_elems)).astype(jnp.float32)


if __name__ == "__main__":
    key = jax.random.PRNGKey(0)
    k1, k2, k3, k4, k5, k6 = jax.random.split(key, 6)

    # 1) Module-spec sized input (2, 4, 16, 16): small -> fused-XLA fast path.
    pred_s = jax.random.normal(k1, (2, 4, 16, 16), dtype=jnp.float32)
    gt_s = jax.random.normal(k2, (2, 4, 16, 16), dtype=jnp.float32)
    loss_s = loss_rec_l1(pred_s, gt_s)
    jax.block_until_ready(loss_s)
    ref_s = jnp.mean(jnp.abs(pred_s - gt_s))
    assert jnp.allclose(loss_s, ref_s, rtol=1e-5, atol=1e-6), (loss_s, ref_s)

    # 2) Kernel path, lane/shard aligned (131072 elements, zero-copy reshape).
    pred_a = jax.random.normal(k3, (4, 8, 64, 64), dtype=jnp.float32)
    gt_a = jax.random.normal(k4, (4, 8, 64, 64), dtype=jnp.float32)
    loss_a = loss_rec_l1(pred_a, gt_a)
    jax.block_until_ready(loss_a)
    ref_a = jnp.mean(jnp.abs(pred_a - gt_a))
    assert jnp.allclose(loss_a, ref_a, rtol=1e-5, atol=1e-6), (loss_a, ref_a)

    # 3) Kernel path, ragged shape: exercises last-step masking + JAX tail.
    pred_r = jax.random.normal(k5, (1, 3, 211, 211), dtype=jnp.float32)
    gt_r = jax.random.normal(k6, (1, 3, 211, 211), dtype=jnp.float32)
    loss_r = loss_rec_l1(pred_r, gt_r)
    jax.block_until_ready(loss_r)
    ref_r = jnp.mean(jnp.abs(pred_r - gt_r))
    assert jnp.allclose(loss_r, ref_r, rtol=1e-5, atol=1e-6), (loss_r, ref_r)

    # 4) bf16 streaming (no wrapper-side pre-cast; kernel upcasts after load).
    pred_b = jax.random.normal(k3, (4, 8, 64, 64), dtype=jnp.bfloat16)
    gt_b = jax.random.normal(k4, (4, 8, 64, 64), dtype=jnp.bfloat16)
    loss_b = loss_rec_l1(pred_b, gt_b)
    jax.block_until_ready(loss_b)
    ref_b = jnp.mean(jnp.abs(pred_b.astype(jnp.float32)
                             - gt_b.astype(jnp.float32)))
    assert jnp.allclose(loss_b, ref_b, rtol=1e-4, atol=1e-5), (loss_b, ref_b)

    print("KERNEL_OK")
</pallas_src>

<mosaic_0001>
module attributes {stable_mosaic.version = 11 : i64} {
  func.func @_l1_partial_sum_kernel(%arg0: i32, %arg1: i32, %arg2: memref<1x512x128xf32, #tpu.memory_space<vmem>>, %arg3: memref<1x512x128xf32, #tpu.memory_space<vmem>>, %arg4: memref<1x64x128xf32, #tpu.memory_space<vmem>>) attributes {dimension_semantics = [#tpu.dimension_semantics<parallel>, #tpu.dimension_semantics<arbitrary>], iteration_bounds = array<i64: 2, 1>, scalar_prefetch = 0 : i64, scratch_operands = 0 : i64, tpu.core_type = #tpu.core_type<tc>, window_params = [{transform_indices = @transform_0, window_bounds = array<i64: 1, 512, 128>}, {transform_indices = @transform_1, window_bounds = array<i64: 1, 512, 128>}, {transform_indices = @transform_2, window_bounds = array<i64: 1, 64, 128>}]} {
    %c0_i32 = arith.constant 0 : i32
    %0 = arith.cmpi eq, %arg1, %c0_i32 : i32
    %1 = arith.extui %0 : i1 to i32
    %c0_i32_0 = arith.constant 0 : i32
    %2 = arith.cmpi ne, %1, %c0_i32_0 : i32
    scf.if %2 {
      %cst_12 = arith.constant 0.000000e+00 : f32
      %13 = vector.broadcast %cst_12 : f32 to vector<1x64x128xf32>
      %c0_13 = arith.constant 0 : index
      %c0_14 = arith.constant 0 : index
      %c0_15 = arith.constant 0 : index
      %14 = vector.load %arg4[%c0_13, %c0_14, %c0_15] : memref<1x64x128xf32, #tpu.memory_space<vmem>>, vector<1x64x128xf32>
      tpu.vector_store %arg4[%c0_13, %c0_14, %c0_15], %13 {strides = array<i32>} : memref<1x64x128xf32, #tpu.memory_space<vmem>>, vector<1x64x128xf32>,
    } else {
    }
    %c0 = arith.constant 0 : index
    %c0_1 = arith.constant 0 : index
    %c0_2 = arith.constant 0 : index
    %3 = vector.load %arg2[%c0, %c0_1, %c0_2] : memref<1x512x128xf32, #tpu.memory_space<vmem>>, vector<1x512x128xf32>
    %c0_3 = arith.constant 0 : index
    %c0_4 = arith.constant 0 : index
    %c0_5 = arith.constant 0 : index
    %4 = vector.load %arg3[%c0_3, %c0_4, %c0_5] : memref<1x512x128xf32, #tpu.memory_space<vmem>>, vector<1x512x128xf32>
    %5 = arith.subf %3, %4 : vector<1x512x128xf32>
    %6 = math.absf %5 : vector<1x512x128xf32>
    %c0_6 = arith.constant 0 : index
    %c0_7 = arith.constant 0 : index
    %c0_8 = arith.constant 0 : index
    %7 = vector.load %arg4[%c0_6, %c0_7, %c0_8] : memref<1x64x128xf32, #tpu.memory_space<vmem>>, vector<1x64x128xf32>
    %8 = vector.shape_cast %6 : vector<1x512x128xf32> to vector<8x64x128xf32>
    %cst = arith.constant dense<0.000000e+00> : vector<64x128xf32>
    %9 = vector.multi_reduction <add>, %8, %cst [0] : vector<8x64x128xf32> to vector<64x128xf32>
    %10 = vector.shape_cast %9 : vector<64x128xf32> to vector<1x64x128xf32>
    %11 = arith.addf %7, %10 : vector<1x64x128xf32>
    %c0_9 = arith.constant 0 : index
    %c0_10 = arith.constant 0 : index
    %c0_11 = arith.constant 0 : index
    %12 = vector.load %arg4[%c0_9, %c0_10, %c0_11] : memref<1x64x128xf32, #tpu.memory_space<vmem>>, vector<1x64x128xf32>
    tpu.vector_store %arg4[%c0_9, %c0_10, %c0_11], %11 {strides = array<i32>} : memref<1x64x128xf32, #tpu.memory_space<vmem>>, vector<1x64x128xf32>,
    return
  }
  func.func @transform_0(%arg0: i32, %arg1: i32) -> (i32, i32, i32) {
    %c0_i32 = arith.constant 0 : i32
    %c0_i32_0 = arith.constant 0 : i32
    return %arg0, %arg1, %c0_i32 : i32, i32, i32
  }
  func.func @transform_1(%arg0: i32, %arg1: i32) -> (i32, i32, i32) {
    %c0_i32 = arith.constant 0 : i32
    %c0_i32_0 = arith.constant 0 : i32
    return %arg0, %arg1, %c0_i32 : i32, i32, i32
  }
  func.func @transform_2(%arg0: i32, %arg1: i32) -> (i32, i32, i32) {
    %c0_i32 = arith.constant 0 : i32
    %c0_i32_0 = arith.constant 0 : i32
    %c0_i32_1 = arith.constant 0 : i32
    return %arg0, %c0_i32, %c0_i32_0 : i32, i32, i32
  }
}

</mosaic_0001>

<llo_original>
// kernel: tpu_custom_call.1
$region0: #{tpu_custom_call.1}
  #allocation0 [shape = 'u32[]', space=smem, size = 0x4, offset = 0x4, fixed_abs, tag = 'smem constant byte address 0x4 - core index']
  #allocation1 [shape = 'u32[144,128]{1,0:T(1,128)}', space=vmem, size = 0x12000, scoped, tag = 'internal scratch']
  %s0 = inlined_call_operand.hbm [shape: f32[2,512,128], index: 0, kind: input, shape index: {}]
  %s1 = inlined_call_operand.hbm [shape: f32[2,512,128], index: 1, kind: input, shape index: {}]
  %s2 = inlined_call_operand.hbm [shape: f32[2,64,128], index: 2, kind: output, shape index: {}]
  %s3 = sld [smem:[#allocation0]]
  $region53: #{tpu_custom_call.1} parent=0
    _
  %s5 = ssub.s32 1, %s3
  %s6 = scalar_select 0, %s5, %s3
  $region1: #{tpu_custom_call.1} parent=0
    #allocation2 [shape = 'u8[524288]{0}', space=vmem, size = 0x80000, scoped, tag = 'input window, operand 0']
    #allocation3 [shape = 's32[2]{0}', space=sflag, size = 0x8, scoped, tag = 'scoped memory for tpu_custom_call.1']
    #allocation4 [shape = 's32[2]{0}', space=sflag, size = 0x8, scoped, tag = 'scoped memory for tpu_custom_call.1']
    #allocation5 [shape = 'u8[524288]{0}', space=vmem, size = 0x80000, scoped, tag = 'input window, operand 1']
    #allocation6 [shape = 's32[2]{0}', space=sflag, size = 0x8, scoped, tag = 'scoped memory for tpu_custom_call.1']
    #allocation7 [shape = 'u8[65536]{0}', space=vmem, size = 0x10000, scoped, tag = 'output window, operand 0']
    %7 = vsyncpa [#allocation3], 0
    %s8 = scalar_lea.sflag [#allocation3], 1
    %9 = vsyncpa %s8, 0
    %10 = vsyncpa [#allocation6], 0
    %s11 = scalar_lea.sflag [#allocation6], 1
    %12 = vsyncpa %s11, 0
    %13 = vsyncpa [#allocation4], 0
    %s14 = scalar_lea.sflag [#allocation4], 1
    %15 = vsyncpa %s14, 0
    loop: start=0, step=1, limit=4
    $region2: #{tpu_custom_call.1} parent=1 // loop_pre_header
      _
    $region3: #{tpu_custom_call.1} parent=1 // loop_header
      %s17 = sphi 0, %s21
      %p18 = scmp.ge.s32.totalorder %s17, 4
      %s24 = sphi 0, %s36
      %s25 = sphi 0, %s32
      %s26 = sphi 0, %s24
      %s27 = sphi 0, %s25
      %s28 = sphi 0, %s26
      %s29 = sphi 0, %s27
      %s41 = sphi 0, %s43
      %s44 = sphi 0, %s41
      %s45 = sphi 0, %s44
      %s61 = sphi 0, %s45
      %s69 = sphi 0, %s71
      %s72 = sphi 0, %s69
      %s73 = sphi 0, %s72
      %s89 = sphi 0, %s73
      %s95 = sphi 0, %s97
      %s98 = sphi 0, %s95
      %s99 = sphi 0, %s98
      %s115 = sphi 0, %s99
    $region4: #{tpu_custom_call.1} parent=1 // loop_header_branch
      %20 = sbr.rel (%p18) target = $region8
    $region5: #{tpu_custom_call.1} parent=1 // loop_body
      %s22 = ssub.s32 %s17, 1
      %s23 = ssub.s32 %s17, 2
      %s30 = sadd.s32 1, %s25
      %p31 = scmp.ge.s32.totalorder %s30, 1
      %s32 = scalar_select %p31, 0, %s30
      %s33 = sadd.s32 1, %s24
      %s34 = scalar_select %p31, %s33, %s24
      %p35 = scmp.ge.s32.totalorder %s34, 2
      %s36 = scalar_select %p35, 0, %s34
      %s37 = ssub.s32 %s24, %s36
      %s38 = ssub.s32 %s25, %s32
      %s39 = sor.u32 %s37, %s38
      %p40 = scmp.eq.s32.totalorder %s39, 0
      %s42 = sadd.s32 %s41, 1
      %s43 = scalar_select %p40, %s41, %s42
      %p46 = pneg %p40
      %p47 = scmp.eq.s32.totalorder %s17, 1
      %p48 = por %p46, %p47
      %p49 = scmp.ne.s32.totalorder %s41, %s44
      %p50 = scmp.eq.s32.totalorder %s17, 0
      %p51 = por %p49, %p50
      %p52 = scmp.ne.s32.totalorder %s41, %s44
      %p53 = scmp.eq.s32.totalorder %s22, 1
      %p54 = por %p52, %p53
      %p55 = scmp.ne.s32.totalorder %s44, %s45
      %p56 = scmp.eq.s32.totalorder %s22, 0
      %p57 = por %p55, %p56
      %p58 = scmp.ne.s32.totalorder %s44, %s45
      %p59 = scmp.eq.s32.totalorder %s23, 1
      %p60 = por %p58, %p59
      %p62 = scmp.ne.s32.totalorder %s45, %s61
      %p63 = scmp.eq.s32.totalorder %s23, 0
      %p64 = por %p62, %p63
      %s65 = ssub.s32 %s24, %s36
      %s66 = ssub.s32 %s25, %s32
      %s67 = sor.u32 %s65, %s66
      %p68 = scmp.eq.s32.totalorder %s67, 0
      %s70 = sadd.s32 %s69, 1
      %s71 = scalar_select %p68, %s69, %s70
      %p74 = pneg %p68
      %p75 = scmp.eq.s32.totalorder %s17, 1
      %p76 = por %p74, %p75
      %p77 = scmp.ne.s32.totalorder %s69, %s72
      %p78 = scmp.eq.s32.totalorder %s17, 0
      %p79 = por %p77, %p78
      %p80 = scmp.ne.s32.totalorder %s69, %s72
      %p81 = scmp.eq.s32.totalorder %s22, 1
      %p82 = por %p80, %p81
      %p83 = scmp.ne.s32.totalorder %s72, %s73
      %p84 = scmp.eq.s32.totalorder %s22, 0
      %p85 = por %p83, %p84
      %p86 = scmp.ne.s32.totalorder %s72, %s73
      %p87 = scmp.eq.s32.totalorder %s23, 1
      %p88 = por %p86, %p87
      %p90 = scmp.ne.s32.totalorder %s73, %s89
      %p91 = scmp.eq.s32.totalorder %s23, 0
      %p92 = por %p90, %p91
      %s93 = ssub.s32 %s24, %s36
      %p94 = scmp.eq.s32.totalorder %s93, 0
      %s96 = sadd.s32 %s95, 1
      %s97 = scalar_select %p94, %s95, %s96
      %p100 = pneg %p94
      %p101 = scmp.eq.s32.totalorder %s17, 1
      %p102 = por %p100, %p101
      %p103 = scmp.ne.s32.totalorder %s95, %s98
      %p104 = scmp.eq.s32.totalorder %s17, 0
      %p105 = por %p103, %p104
      %p106 = scmp.ne.s32.totalorder %s95, %s98
      %p107 = scmp.eq.s32.totalorder %s22, 1
      %p108 = por %p106, %p107
      %p109 = scmp.ne.s32.totalorder %s98, %s99
      %p110 = scmp.eq.s32.totalorder %s22, 0
      %p111 = por %p109, %p110
      %p112 = scmp.ne.s32.totalorder %s98, %s99
      %p113 = scmp.eq.s32.totalorder %s23, 1
      %p114 = por %p112, %p113
      %p116 = scmp.ne.s32.totalorder %s99, %s115
      %p117 = scmp.eq.s32.totalorder %s23, 0
      %p118 = por %p116, %p117
      %p119 = scmp.le.s32.totalorder 1, %s17
      %p120 = scmp.lt.s32.totalorder %s17, 3
      %p121 = pnand %p119, %p120
      %p122 = pneg %p121
      // Predicated region
      $region9: #{tpu_custom_call.1} parent=5 // pred_check
        _
      $region10: #{tpu_custom_call.1} parent=5 // pred_check_branch
        %124 = sbr.rel (%p121) target = $region12
      $region11: #{tpu_custom_call.1} parent=5 // pred_region
        %s125 = ssub.s32 %s17, 1
      $region12: #{tpu_custom_call.1} parent=5 // pred_fallthru
        _
      %p126 = scmp.lt.s32.totalorder %s17, 2
      // Predicated region
      $region13: #{tpu_custom_call.1} parent=5 // pred_check
        %p127 = pneg %p126
      $region14: #{tpu_custom_call.1} parent=5 // pred_check_branch
        %129 = sbr.rel (%p127) target = $region16
      $region15: #{tpu_custom_call.1} parent=5 // pred_region
        // Predicated region
        $region17: #{tpu_custom_call.1} parent=15 // pred_check
          %p130 = pneg %p51
        $region18: #{tpu_custom_call.1} parent=15 // pred_check_branch
          %132 = sbr.rel (%p130) target = $region20
        $region19: #{tpu_custom_call.1} parent=15 // pred_region
          %s133 = sand.u32 %s41, 1
          %s134 = scalar_lea.sflag [#allocation3], %s133
          %s135 = sand.u32 %s41, 1
          %s136 = smul.addr %s135, 512
          %s137 = scalar_lea.vmem [#allocation2], %s136
          %s138 = smul.u32 64, %s25
          %s140 = ssub.s32 8192, 8192
          %141 = vsyncadd %s134, %s140
          %s142 = smul.addr %s24, 64
          %s143 = sadd.s32 %s138, %s142
          %s144 = smul.addr %s143, 128
          %s145 = scalar_lea.hbm %s0, %s144
          %s146 = sshll.u32 %s137, 4
          %s147 = int_to_ptr.vmem [resolvable:$true] %s146
          %152 = dma.hbm_to_vmem [thread:$0]  %s145, 8192, %s147, %s134, 128, 128, 8
        $region20: #{tpu_custom_call.1} parent=15 // pred_fallthru
          _
        // Predicated region
        $region21: #{tpu_custom_call.1} parent=15 // pred_check
          %p153 = pneg %p79
        $region22: #{tpu_custom_call.1} parent=15 // pred_check_branch
          %155 = sbr.rel (%p153) target = $region24
        $region23: #{tpu_custom_call.1} parent=15 // pred_region
          %s156 = sand.u32 %s69, 1
          %s157 = scalar_lea.sflag [#allocation6], %s156
          %s158 = sand.u32 %s69, 1
          %s159 = smul.addr %s158, 512
          %s160 = scalar_lea.vmem [#allocation5], %s159
          %s161 = smul.u32 64, %s25
          %s163 = ssub.s32 8192, 8192
          %164 = vsyncadd %s157, %s163
          %s165 = smul.addr %s24, 64
          %s166 = sadd.s32 %s161, %s165
          %s167 = smul.addr %s166, 128
          %s168 = scalar_lea.hbm %s1, %s167
          %s169 = sshll.u32 %s160, 4
          %s170 = int_to_ptr.vmem [resolvable:$true] %s169
          %175 = dma.hbm_to_vmem [thread:$0]  %s168, 8192, %s170, %s157, 128, 128, 8
        $region24: #{tpu_custom_call.1} parent=15 // pred_fallthru
          _
      $region16: #{tpu_custom_call.1} parent=5 // pred_fallthru
        _
      %p176 = scmp.le.s32.totalorder 1, %s17
      %p177 = scmp.lt.s32.totalorder %s17, 3
      %p178 = pnand %p176, %p177
      %p179 = pneg %p178
      // Predicated region
      $region25: #{tpu_custom_call.1} parent=5 // pred_check
        _
      $region26: #{tpu_custom_call.1} parent=5 // pred_check_branch
        %181 = sbr.rel (%p178) target = $region28
      $region27: #{tpu_custom_call.1} parent=5 // pred_region
        %s182 = ssub.s32 %s17, 1
        %s183 = sand.u32 %s44, 1
        %s184 = scalar_lea.sflag [#allocation3], %s183
        %s185 = sand.u32 %s44, 1
        %s186 = smul.addr %s185, 512
        %s187 = scalar_lea.vmem [#allocation2], %s186
        // Predicated region
        $region29: #{tpu_custom_call.1} parent=27 // pred_check
          %p188 = pneg %p57
        $region30: #{tpu_custom_call.1} parent=27 // pred_check_branch
          %190 = sbr.rel (%p188) target = $region32
        $region31: #{tpu_custom_call.1} parent=27 // pred_region
          %191 = dma.done %s184, 8192
        $region32: #{tpu_custom_call.1} parent=27 // pred_fallthru
          _
        %s192 = sand.u32 %s72, 1
        %s193 = scalar_lea.sflag [#allocation6], %s192
        %s194 = sand.u32 %s72, 1
        %s195 = smul.addr %s194, 512
        %s196 = scalar_lea.vmem [#allocation5], %s195
        // Predicated region
        $region33: #{tpu_custom_call.1} parent=27 // pred_check
          %p197 = pneg %p85
        $region34: #{tpu_custom_call.1} parent=27 // pred_check_branch
          %199 = sbr.rel (%p197) target = $region36
        $region35: #{tpu_custom_call.1} parent=27 // pred_region
          %200 = dma.done %s193, 8192
        $region36: #{tpu_custom_call.1} parent=27 // pred_fallthru
          _
        %s201 = sand.u32 %s44, 1
        %s202 = scalar_lea.sflag [#allocation3], %s201
        %s203 = sand.u32 %s44, 1
        %s204 = smul.addr %s203, 512
        %s205 = scalar_lea.vmem [#allocation2], %s204
        %p206 = pneg %p57
        %p207 = pneg %p54
        %s208 = sand.u32 %s72, 1
        %s209 = scalar_lea.sflag [#allocation6], %s208
        %s210 = sand.u32 %s72, 1
        %s211 = smul.addr %s210, 512
        %s212 = scalar_lea.vmem [#allocation5], %s211
        %p213 = pneg %p85
        %p214 = pneg %p82
        %p215 = pneg %p111
        %p216 = pneg %p108
        %s217 = sand.u32 %s98, 1
        %s218 = scalar_lea.sflag [#allocation4], %s217
        %s219 = sand.u32 %s98, 1
        %s220 = smul.addr %s219, 64
        %s221 = scalar_lea.vmem [#allocation7], %s220
        %s222 = smul.u32 64, %s27
        %s223 = smul.u32 64, %s27
        %p224 = scmp.eq.s32.totalorder %s27, 0
        // Predicated region
        $region37: #{tpu_custom_call.1} parent=27 // pred_check
          %p225 = pneg %p224
        $region38: #{tpu_custom_call.1} parent=27 // pred_check_branch
          %227 = sbr.rel (%p225) target = $region40
        $region39: #{tpu_custom_call.1} parent=27 // pred_region
          %228 = vst [vmem:[%s221] sm:$0xff] 0.0
          %229 = vst [vmem:[%s221 + $0x8] sm:$0xff] 0.0
          %230 = vst [vmem:[%s221 + $0x10] sm:$0xff] 0.0
          %231 = vst [vmem:[%s221 + $0x18] sm:$0xff] 0.0
          %232 = vst [vmem:[%s221 + $0x20] sm:$0xff] 0.0
          %233 = vst [vmem:[%s221 + $0x28] sm:$0xff] 0.0
          %234 = vst [vmem:[%s221 + $0x30] sm:$0xff] 0.0
          %235 = vst [vmem:[%s221 + $0x38] sm:$0xff] 0.0
        $region40: #{tpu_custom_call.1} parent=27 // pred_fallthru
          _
        %v236 = vld [vmem:[%s187] sm:$0xff]
        %v237 = vld [vmem:[%s187 + $0x8] sm:$0xff]
        %v238 = vld [vmem:[%s187 + $0x10] sm:$0xff]
        %v239 = vld [vmem:[%s187 + $0x18] sm:$0xff]
        %v240 = vld [vmem:[%s187 + $0x20] sm:$0xff]
        %v241 = vld [vmem:[%s187 + $0x28] sm:$0xff]
        %v242 = vld [vmem:[%s187 + $0x30] sm:$0xff]
        %v243 = vld [vmem:[%s187 + $0x38] sm:$0xff]
        %v244 = vld [vmem:[%s187 + $0x40] sm:$0xff]
        %v245 = vld [vmem:[%s187 + $0x48] sm:$0xff]
        %v246 = vld [vmem:[%s187 + $0x50] sm:$0xff]
        %v247 = vld [vmem:[%s187 + $0x58] sm:$0xff]
        %v248 = vld [vmem:[%s187 + $0x60] sm:$0xff]
        %v249 = vld [vmem:[%s187 + $0x68] sm:$0xff]
        %v250 = vld [vmem:[%s187 + $0x70] sm:$0xff]
        %v251 = vld [vmem:[%s187 + $0x78] sm:$0xff]
        %v252 = vld [vmem:[%s187 + $0x80] sm:$0xff]
        %v253 = vld [vmem:[%s187 + $0x88] sm:$0xff]
        %v254 = vld [vmem:[%s187 + $0x90] sm:$0xff]
        %v255 = vld [vmem:[%s187 + $0x98] sm:$0xff]
        %v256 = vld [vmem:[%s187 + $0xa0] sm:$0xff]
        %v257 = vld [vmem:[%s187 + $0xa8] sm:$0xff]
        %v258 = vld [vmem:[%s187 + $0xb0] sm:$0xff]
        %v259 = vld [vmem:[%s187 + $0xb8] sm:$0xff]
        %v260 = vld [vmem:[%s187 + $0xc0] sm:$0xff]
        %v261 = vld [vmem:[%s187 + $0xc8] sm:$0xff]
        %v262 = vld [vmem:[%s187 + $0xd0] sm:$0xff]
        %v263 = vld [vmem:[%s187 + $0xd8] sm:$0xff]
        %v264 = vld [vmem:[%s187 + $0xe0] sm:$0xff]
        %v265 = vld [vmem:[%s187 + $0xe8] sm:$0xff]
        %v266 = vld [vmem:[%s187 + $0xf0] sm:$0xff]
        %v267 = vld [vmem:[%s187 + $0xf8] sm:$0xff]
        %v268 = vld [vmem:[%s187 + $0x100] sm:$0xff]
        %v269 = vld [vmem:[%s187 + $0x108] sm:$0xff]
        %v270 = vld [vmem:[%s187 + $0x110] sm:$0xff]
        %v271 = vld [vmem:[%s187 + $0x118] sm:$0xff]
        %v272 = vld [vmem:[%s187 + $0x120] sm:$0xff]
        %v273 = vld [vmem:[%s187 + $0x128] sm:$0xff]
        %v274 = vld [vmem:[%s187 + $0x130] sm:$0xff]
        %v275 = vld [vmem:[%s187 + $0x138] sm:$0xff]
        %v276 = vld [vmem:[%s187 + $0x140] sm:$0xff]
        %v277 = vld [vmem:[%s187 + $0x148] sm:$0xff]
        %v278 = vld [vmem:[%s187 + $0x150] sm:$0xff]
        %v279 = vld [vmem:[%s187 + $0x158] sm:$0xff]
        %v280 = vld [vmem:[%s187 + $0x160] sm:$0xff]
        %v281 = vld [vmem:[%s187 + $0x168] sm:$0xff]
        %v282 = vld [vmem:[%s187 + $0x170] sm:$0xff]
        %v283 = vld [vmem:[%s187 + $0x178] sm:$0xff]
        %v284 = vld [vmem:[%s187 + $0x180] sm:$0xff]
        %v285 = vld [vmem:[%s187 + $0x188] sm:$0xff]
        %v286 = vld [vmem:[%s187 + $0x190] sm:$0xff]
        %v287 = vld [vmem:[%s187 + $0x198] sm:$0xff]
        %v288 = vld [vmem:[%s187 + $0x1a0] sm:$0xff]
        %v289 = vld [vmem:[%s187 + $0x1a8] sm:$0xff]
        %v290 = vld [vmem:[%s187 + $0x1b0] sm:$0xff]
        %v291 = vld [vmem:[%s187 + $0x1b8] sm:$0xff]
        %v292 = vld [vmem:[%s187 + $0x1c0] sm:$0xff]
        %v293 = vld [vmem:[%s187 + $0x1c8] sm:$0xff]
        %v294 = vld [vmem:[%s187 + $0x1d0] sm:$0xff]
        %v295 = vld [vmem:[%s187 + $0x1d8] sm:$0xff]
        %v296 = vld [vmem:[%s187 + $0x1e0] sm:$0xff]
        %v297 = vld [vmem:[%s187 + $0x1e8] sm:$0xff]
        %v298 = vld [vmem:[%s187 + $0x1f0] sm:$0xff]
        %v299 = vld [vmem:[%s187 + $0x1f8] sm:$0xff]
        %v300 = vld [vmem:[%s196] sm:$0xff]
        %v301 = vld [vmem:[%s196 + $0x8] sm:$0xff]
        %v302 = vld [vmem:[%s196 + $0x10] sm:$0xff]
        %v303 = vld [vmem:[%s196 + $0x18] sm:$0xff]
        %v304 = vld [vmem:[%s196 + $0x20] sm:$0xff]
        %v305 = vld [vmem:[%s196 + $0x28] sm:$0xff]
        %v306 = vld [vmem:[%s196 + $0x30] sm:$0xff]
        %v307 = vld [vmem:[%s196 + $0x38] sm:$0xff]
        %v308 = vld [vmem:[%s196 + $0x40] sm:$0xff]
        %v309 = vld [vmem:[%s196 + $0x48] sm:$0xff]
        %v310 = vld [vmem:[%s196 + $0x50] sm:$0xff]
        %v311 = vld [vmem:[%s196 + $0x58] sm:$0xff]
        %v312 = vld [vmem:[%s196 + $0x60] sm:$0xff]
        %v313 = vld [vmem:[%s196 + $0x68] sm:$0xff]
        %v314 = vld [vmem:[%s196 + $0x70] sm:$0xff]
        %v315 = vld [vmem:[%s196 + $0x78] sm:$0xff]
        %v316 = vld [vmem:[%s196 + $0x80] sm:$0xff]
        %v317 = vld [vmem:[%s196 + $0x88] sm:$0xff]
        %v318 = vld [vmem:[%s196 + $0x90] sm:$0xff]
        %v319 = vld [vmem:[%s196 + $0x98] sm:$0xff]
        %v320 = vld [vmem:[%s196 + $0xa0] sm:$0xff]
        %v321 = vld [vmem:[%s196 + $0xa8] sm:$0xff]
        %v322 = vld [vmem:[%s196 + $0xb0] sm:$0xff]
        %v323 = vld [vmem:[%s196 + $0xb8] sm:$0xff]
        %v324 = vld [vmem:[%s196 + $0xc0] sm:$0xff]
        %v325 = vld [vmem:[%s196 + $0xc8] sm:$0xff]
        %v326 = vld [vmem:[%s196 + $0xd0] sm:$0xff]
        %v327 = vld [vmem:[%s196 + $0xd8] sm:$0xff]
        %v328 = vld [vmem:[%s196 + $0xe0] sm:$0xff]
        %v329 = vld [vmem:[%s196 + $0xe8] sm:$0xff]
        %v330 = vld [vmem:[%s196 + $0xf0] sm:$0xff]
        %v331 = vld [vmem:[%s196 + $0xf8] sm:$0xff]
        %v332 = vld [vmem:[%s196 + $0x100] sm:$0xff]
        %v333 = vld [vmem:[%s196 + $0x108] sm:$0xff]
        %v334 = vld [vmem:[%s196 + $0x110] sm:$0xff]
        %v335 = vld [vmem:[%s196 + $0x118] sm:$0xff]
        %v336 = vld [vmem:[%s196 + $0x120] sm:$0xff]
        %v337 = vld [vmem:[%s196 + $0x128] sm:$0xff]
        %v338 = vld [vmem:[%s196 + $0x130] sm:$0xff]
        %v339 = vld [vmem:[%s196 + $0x138] sm:$0xff]
        %v340 = vld [vmem:[%s196 + $0x140] sm:$0xff]
        %v341 = vld [vmem:[%s196 + $0x148] sm:$0xff]
        %v342 = vld [vmem:[%s196 + $0x150] sm:$0xff]
        %v343 = vld [vmem:[%s196 + $0x158] sm:$0xff]
        %v344 = vld [vmem:[%s196 + $0x160] sm:$0xff]
        %v345 = vld [vmem:[%s196 + $0x168] sm:$0xff]
        %v346 = vld [vmem:[%s196 + $0x170] sm:$0xff]
        %v347 = vld [vmem:[%s196 + $0x178] sm:$0xff]
        %v348 = vld [vmem:[%s196 + $0x180] sm:$0xff]
        %v349 = vld [vmem:[%s196 + $0x188] sm:$0xff]
        %v350 = vld [vmem:[%s196 + $0x190] sm:$0xff]
        %v351 = vld [vmem:[%s196 + $0x198] sm:$0xff]
        %v352 = vld [vmem:[%s196 + $0x1a0] sm:$0xff]
        %v353 = vld [vmem:[%s196 + $0x1a8] sm:$0xff]
        %v354 = vld [vmem:[%s196 + $0x1b0] sm:$0xff]
        %v355 = vld [vmem:[%s196 + $0x1b8] sm:$0xff]
        %v356 = vld [vmem:[%s196 + $0x1c0] sm:$0xff]
        %v357 = vld [vmem:[%s196 + $0x1c8] sm:$0xff]
        %v358 = vld [vmem:[%s196 + $0x1d0] sm:$0xff]
        %v359 = vld [vmem:[%s196 + $0x1d8] sm:$0xff]
        %v360 = vld [vmem:[%s196 + $0x1e0] sm:$0xff]
        %v361 = vld [vmem:[%s196 + $0x1e8] sm:$0xff]
        %v362 = vld [vmem:[%s196 + $0x1f0] sm:$0xff]
        %v363 = vld [vmem:[%s196 + $0x1f8] sm:$0xff]
        %v364 = vsub.f32 %v236, %v300
        %v365 = vsub.f32 %v237, %v301
        %v366 = vsub.f32 %v238, %v302
        %v367 = vsub.f32 %v239, %v303
        %v368 = vsub.f32 %v240, %v304
        %v369 = vsub.f32 %v241, %v305
        %v370 = vsub.f32 %v242, %v306
        %v371 = vsub.f32 %v243, %v307
        %v372 = vsub.f32 %v244, %v308
        %v373 = vsub.f32 %v245, %v309
        %v374 = vsub.f32 %v246, %v310
        %v375 = vsub.f32 %v247, %v311
        %v376 = vsub.f32 %v248, %v312
        %v377 = vsub.f32 %v249, %v313
        %v378 = vsub.f32 %v250, %v314
        %v379 = vsub.f32 %v251, %v315
        %v380 = vsub.f32 %v252, %v316
        %v381 = vsub.f32 %v253, %v317
        %v382 = vsub.f32 %v254, %v318
        %v383 = vsub.f32 %v255, %v319
        %v384 = vsub.f32 %v256, %v320
        %v385 = vsub.f32 %v257, %v321
        %v386 = vsub.f32 %v258, %v322
        %v387 = vsub.f32 %v259, %v323
        %v388 = vsub.f32 %v260, %v324
        %v389 = vsub.f32 %v261, %v325
        %v390 = vsub.f32 %v262, %v326
        %v391 = vsub.f32 %v263, %v327
        %v392 = vsub.f32 %v264, %v328
        %v393 = vsub.f32 %v265, %v329
        %v394 = vsub.f32 %v266, %v330
        %v395 = vsub.f32 %v267, %v331
        %v396 = vsub.f32 %v268, %v332
        %v397 = vsub.f32 %v269, %v333
        %v398 = vsub.f32 %v270, %v334
        %v399 = vsub.f32 %v271, %v335
        %v400 = vsub.f32 %v272, %v336
        %v401 = vsub.f32 %v273, %v337
        %v402 = vsub.f32 %v274, %v338
        %v403 = vsub.f32 %v275, %v339
        %v404 = vsub.f32 %v276, %v340
        %v405 = vsub.f32 %v277, %v341
        %v406 = vsub.f32 %v278, %v342
        %v407 = vsub.f32 %v279, %v343
        %v408 = vsub.f32 %v280, %v344
        %v409 = vsub.f32 %v281, %v345
        %v410 = vsub.f32 %v282, %v346
        %v411 = vsub.f32 %v283, %v347
        %v412 = vsub.f32 %v284, %v348
        %v413 = vsub.f32 %v285, %v349
        %v414 = vsub.f32 %v286, %v350
        %v415 = vsub.f32 %v287, %v351
        %v416 = vsub.f32 %v288, %v352
        %v417 = vsub.f32 %v289, %v353
        %v418 = vsub.f32 %v290, %v354
        %v419 = vsub.f32 %v291, %v355
        %v420 = vsub.f32 %v292, %v356
        %v421 = vsub.f32 %v293, %v357
        %v422 = vsub.f32 %v294, %v358
        %v423 = vsub.f32 %v295, %v359
        %v424 = vsub.f32 %v296, %v360
        %v425 = vsub.f32 %v297, %v361
        %v426 = vsub.f32 %v298, %v362
        %v427 = vsub.f32 %v299, %v363
        %v428 = vand.u32 2147483647, %v364
        %v429 = vand.u32 2147483647, %v365
        %v430 = vand.u32 2147483647, %v366
        %v431 = vand.u32 2147483647, %v367
        %v432 = vand.u32 2147483647, %v368
        %v433 = vand.u32 2147483647, %v369
        %v434 = vand.u32 2147483647, %v370
        %v435 = vand.u32 2147483647, %v371
        %v436 = vand.u32 2147483647, %v372
        %v437 = vand.u32 2147483647, %v373
        %v438 = vand.u32 2147483647, %v374
        %v439 = vand.u32 2147483647, %v375
        %v440 = vand.u32 2147483647, %v376
        %v441 = vand.u32 2147483647, %v377
        %v442 = vand.u32 2147483647, %v378
        %v443 = vand.u32 2147483647, %v379
        %v444 = vand.u32 2147483647, %v380
        %v445 = vand.u32 2147483647, %v381
        %v446 = vand.u32 2147483647, %v382
        %v447 = vand.u32 2147483647, %v383
        %v448 = vand.u32 2147483647, %v384
        %v449 = vand.u32 2147483647, %v385
        %v450 = vand.u32 2147483647, %v386
        %v451 = vand.u32 2147483647, %v387
        %v452 = vand.u32 2147483647, %v388
        %v453 = vand.u32 2147483647, %v389
        %v454 = vand.u32 2147483647, %v390
        %v455 = vand.u32 2147483647, %v391
        %v456 = vand.u32 2147483647, %v392
        %v457 = vand.u32 2147483647, %v393
        %v458 = vand.u32 2147483647, %v394
        %v459 = vand.u32 2147483647, %v395
        %v460 = vand.u32 2147483647, %v396
        %v461 = vand.u32 2147483647, %v397
        %v462 = vand.u32 2147483647, %v398
        %v463 = vand.u32 2147483647, %v399
        %v464 = vand.u32 2147483647, %v400
        %v465 = vand.u32 2147483647, %v401
        %v466 = vand.u32 2147483647, %v402
        %v467 = vand.u32 2147483647, %v403
        %v468 = vand.u32 2147483647, %v404
        %v469 = vand.u32 2147483647, %v405
        %v470 = vand.u32 2147483647, %v406
        %v471 = vand.u32 2147483647, %v407
        %v472 = vand.u32 2147483647, %v408
        %v473 = vand.u32 2147483647, %v409
        %v474 = vand.u32 2147483647, %v410
        %v475 = vand.u32 2147483647, %v411
        %v476 = vand.u32 2147483647, %v412
        %v477 = vand.u32 2147483647, %v413
        %v478 = vand.u32 2147483647, %v414
        %v479 = vand.u32 2147483647, %v415
        %v480 = vand.u32 2147483647, %v416
        %v481 = vand.u32 2147483647, %v417
        %v482 = vand.u32 2147483647, %v418
        %v483 = vand.u32 2147483647, %v419
        %v484 = vand.u32 2147483647, %v420
        %v485 = vand.u32 2147483647, %v421
        %v486 = vand.u32 2147483647, %v422
        %v487 = vand.u32 2147483647, %v423
        %v488 = vand.u32 2147483647, %v424
        %v489 = vand.u32 2147483647, %v425
        %v490 = vand.u32 2147483647, %v426
        %v491 = vand.u32 2147483647, %v427
        %v492 = vld [vmem:[%s221] sm:$0xff]
        %v493 = vld [vmem:[%s221 + $0x8] sm:$0xff]
        %v494 = vld [vmem:[%s221 + $0x10] sm:$0xff]
        %v495 = vld [vmem:[%s221 + $0x18] sm:$0xff]
        %v496 = vld [vmem:[%s221 + $0x20] sm:$0xff]
        %v497 = vld [vmem:[%s221 + $0x28] sm:$0xff]
        %v498 = vld [vmem:[%s221 + $0x30] sm:$0xff]
        %v499 = vld [vmem:[%s221 + $0x38] sm:$0xff]
        %v500 = vadd.f32 %v428, %v436
        %v501 = vadd.f32 %v500, %v444
        %v502 = vadd.f32 %v501, %v452
        %v503 = vadd.f32 %v502, %v460
        %v504 = vadd.f32 %v503, %v468
        %v505 = vadd.f32 %v504, %v476
        %v506 = vadd.f32 %v505, %v484
        %v507 = vadd.f32 %v429, %v437
        %v508 = vadd.f32 %v507, %v445
        %v509 = vadd.f32 %v508, %v453
        %v510 = vadd.f32 %v509, %v461
        %v511 = vadd.f32 %v510, %v469
        %v512 = vadd.f32 %v511, %v477
        %v513 = vadd.f32 %v512, %v485
        %v514 = vadd.f32 %v430, %v438
        %v515 = vadd.f32 %v514, %v446
        %v516 = vadd.f32 %v515, %v454
        %v517 = vadd.f32 %v516, %v462
        %v518 = vadd.f32 %v517, %v470
        %v519 = vadd.f32 %v518, %v478
        %v520 = vadd.f32 %v519, %v486
        %v521 = vadd.f32 %v431, %v439
        %v522 = vadd.f32 %v521, %v447
        %v523 = vadd.f32 %v522, %v455
        %v524 = vadd.f32 %v523, %v463
        %v525 = vadd.f32 %v524, %v471
        %v526 = vadd.f32 %v525, %v479
        %v527 = vadd.f32 %v526, %v487
        %v528 = vadd.f32 %v432, %v440
        %v529 = vadd.f32 %v528, %v448
        %v530 = vadd.f32 %v529, %v456
        %v531 = vadd.f32 %v530, %v464
        %v532 = vadd.f32 %v531, %v472
        %v533 = vadd.f32 %v532, %v480
        %v534 = vadd.f32 %v533, %v488
        %v535 = vadd.f32 %v433, %v441
        %v536 = vadd.f32 %v535, %v449
        %v537 = vadd.f32 %v536, %v457
        %v538 = vadd.f32 %v537, %v465
        %v539 = vadd.f32 %v538, %v473
        %v540 = vadd.f32 %v539, %v481
        %v541 = vadd.f32 %v540, %v489
        %v542 = vadd.f32 %v434, %v442
        %v543 = vadd.f32 %v542, %v450
        %v544 = vadd.f32 %v543, %v458
        %v545 = vadd.f32 %v544, %v466
        %v546 = vadd.f32 %v545, %v474
        %v547 = vadd.f32 %v546, %v482
        %v548 = vadd.f32 %v547, %v490
        %v549 = vadd.f32 %v435, %v443
        %v550 = vadd.f32 %v549, %v451
        %v551 = vadd.f32 %v550, %v459
        %v552 = vadd.f32 %v551, %v467
        %v553 = vadd.f32 %v552, %v475
        %v554 = vadd.f32 %v553, %v483
        %v555 = vadd.f32 %v554, %v491
        %v556 = vadd.f32 %v492, %v506
        %v557 = vadd.f32 %v493, %v513
        %v558 = vadd.f32 %v494, %v520
        %v559 = vadd.f32 %v495, %v527
        %v560 = vadd.f32 %v496, %v534
        %v561 = vadd.f32 %v497, %v541
        %v562 = vadd.f32 %v498, %v548
        %v563 = vadd.f32 %v499, %v555
        %564 = vst [vmem:[%s221] sm:$0xff] %v556
        %565 = vst [vmem:[%s221 + $0x8] sm:$0xff] %v557
        %566 = vst [vmem:[%s221 + $0x10] sm:$0xff] %v558
        %567 = vst [vmem:[%s221 + $0x18] sm:$0xff] %v559
        %568 = vst [vmem:[%s221 + $0x20] sm:$0xff] %v560
        %569 = vst [vmem:[%s221 + $0x28] sm:$0xff] %v561
        %570 = vst [vmem:[%s221 + $0x30] sm:$0xff] %v562
        %571 = vst [vmem:[%s221 + $0x38] sm:$0xff] %v563
        %s572 = sand.u32 %s98, 1
        %s573 = scalar_lea.sflag [#allocation4], %s572
        %s574 = sand.u32 %s98, 1
        %s575 = smul.addr %s574, 64
        %s576 = scalar_lea.vmem [#allocation7], %s575
        // Predicated region
        $region41: #{tpu_custom_call.1} parent=27 // pred_check
          %p577 = pneg %p108
        $region42: #{tpu_custom_call.1} parent=27 // pred_check_branch
          %579 = sbr.rel (%p577) target = $region44
        $region43: #{tpu_custom_call.1} parent=27 // pred_region
          %s581 = ssub.s32 1024, 1024
          %582 = vsyncadd %s573, %s581
          %s583 = smul.addr %s26, 8
          %s584 = smul.addr %s583, 128
          %s585 = scalar_lea.hbm %s2, %s584
          %s586 = sshll.u32 %s576, 4
          %s587 = int_to_ptr.vmem [resolvable:$true] %s586
          %592 = dma.vmem_to_hbm [thread:$0]  %s587, 1024, %s585, %s573, 128, 128, 8
        $region44: #{tpu_custom_call.1} parent=27 // pred_fallthru
          _
      $region28: #{tpu_custom_call.1} parent=5 // pred_fallthru
        _
      %p593 = scmp.le.s32.totalorder 2, %s17
      // Predicated region
      $region45: #{tpu_custom_call.1} parent=5 // pred_check
        %p594 = pneg %p593
      $region46: #{tpu_custom_call.1} parent=5 // pred_check_branch
        %596 = sbr.rel (%p594) target = $region48
      $region47: #{tpu_custom_call.1} parent=5 // pred_region
        %s597 = ssub.s32 %s17, 2
        // Predicated region
        $region49: #{tpu_custom_call.1} parent=47 // pred_check
          %p598 = pneg %p114
        $region50: #{tpu_custom_call.1} parent=47 // pred_check_branch
          %600 = sbr.rel (%p598) target = $region52
        $region51: #{tpu_custom_call.1} parent=47 // pred_region
          %s601 = sand.u32 %s99, 1
          %s602 = scalar_lea.sflag [#allocation4], %s601
          %s603 = sand.u32 %s99, 1
          %s604 = smul.addr %s603, 64
          %s605 = scalar_lea.vmem [#allocation7], %s604
          %606 = dma.done %s602, 1024
        $region52: #{tpu_custom_call.1} parent=47 // pred_fallthru
          _
      $region48: #{tpu_custom_call.1} parent=5 // pred_fallthru
        _
    $region6: #{tpu_custom_call.1} parent=1 // loop_footer
      %s21 = sadd.s32 1, %s17
    $region7: #{tpu_custom_call.1} parent=1 // loop_footer_branch
      %16 = sbr.rel target = $region3
    $region8: #{tpu_custom_call.1} parent=1 // loop_exit
      _
    %607 = vsyncpa [#allocation3], 1
    %s608 = scalar_lea.sflag [#allocation3], 1
    %609 = vsyncpa %s608, 1
    %610 = vsyncpa [#allocation6], 1
    %s611 = scalar_lea.sflag [#allocation6], 1
    %612 = vsyncpa %s611, 1
    %613 = vsyncpa [#allocation4], 1
    %s614 = scalar_lea.sflag [#allocation4], 1
    %615 = vsyncpa %s614, 1

</llo_original>
